<compile_context>
chip_gen: v6e
topology: v6e:2x2x1
jax: 0.10.0
libtpu: 0.0.40
codegen_flags: <defaults>
</compile_context>

<pallas_src>
import functools
import math

import jax
import jax.numpy as jnp
import numpy as np
from jax.experimental import pallas as pl
from jax.experimental.pallas import tpu as pltpu


def _round_up(x, m):
    return ((x + m - 1) // m) * m


def _default_num_cores():
    """2 grid-parallel 'cores' only on v7x (2 TensorCores/chip), else 1."""
    try:
        kind = jax.devices()[0].device_kind.lower()
    except Exception:
        return 1
    return 2 if "v7" in kind else 1


def _build_diff_selector(emb_dim):
    """(3, 8, 3E) +/-1 selector.

    With products P0 = srcs_p*tars_p, P1 = srcs_n*tars_p, P2 = srcs_p*tars_n
    (each (BN, 3E), channels packed [int, auth, hub]),
        D = sum_p  dsel[p] @ P_p^T            # (8, BN)
    gives per row n the eight (negative - positive) BPR score differences:
        0: n_edge_src - p_edge      1: n_edge_tar - p_edge
        2: n_auth_tar - p_auth      3: n_hub_src  - p_hub
        4: n_int_tar  - p_int       5: n_hub_tar  - p_hub
        6: n_int_src  - p_int       7: n_auth_src - p_auth
    """
    e = emb_dim
    d = np.zeros((3, 8, 3 * e), np.float32)

    def put(prod, row, ch, val):
        d[prod, row, ch * e:(ch + 1) * e] = val

    for ch in range(3):                       # row 0: n_edge_src - p_edge
        put(1, 0, ch, 1.0); put(0, 0, ch, -1.0)
    for ch in range(3):                       # row 1: n_edge_tar - p_edge
        put(2, 1, ch, 1.0); put(0, 1, ch, -1.0)
    put(2, 2, 1, 1.0); put(0, 2, 1, -1.0)     # row 2: n_auth_tar - p_auth
    put(1, 3, 2, 1.0); put(0, 3, 2, -1.0)     # row 3: n_hub_src  - p_hub
    put(2, 4, 0, 1.0); put(0, 4, 0, -1.0)     # row 4: n_int_tar  - p_int
    put(2, 5, 2, 1.0); put(0, 5, 2, -1.0)     # row 5: n_hub_tar  - p_hub
    put(1, 6, 0, 1.0); put(0, 6, 0, -1.0)     # row 6: n_int_src  - p_int
    put(1, 7, 1, 1.0); put(0, 7, 1, -1.0)     # row 7: n_auth_src - p_auth
    return jnp.asarray(d)


# ----------------------------------------------------------------------------
# Pallas kernel: one row-block -> dense accumulate of the 8 BPR row losses
# ----------------------------------------------------------------------------
def _odin_block_kernel(dsel_ref, sp_ref, tp_ref, sn_ref, tn_ref, w_ref,
                       out_ref, acc_ref, *, inv_n, n_inner):
    i = pl.program_id(1)  # inner (reduction) grid index

    @pl.when(i == 0)
    def _init():
        acc_ref[...] = jnp.zeros_like(acc_ref)

    # transfer-dtype operands straight from the refs (no f32 materialization)
    sp = sp_ref[...]            # (BN, 3E)
    tp = tp_ref[...]
    sn = sn_ref[...]
    tn = tn_ref[...]
    d0 = dsel_ref[0]            # (8, 3E) selector for srcs_p*tars_p
    d1 = dsel_ref[1]            #                      srcs_n*tars_p
    d2 = dsel_ref[2]            #                      srcs_p*tars_n

    def dg(sel, prod):          # (8,3E) x (BN,3E) -> (8,BN), contract last dims
        return jax.lax.dot_general(
            sel, prod, (((1,), (1,)), ((), ())),
            preferred_element_type=jnp.float32)

    # D[r, n] = negative_score - positive_score for BPR pair r, row n (lane-dense)
    D = dg(d0, sp * tp) + dg(d1, sn * tp) + dg(d2, sp * tn)          # (8, BN) f32

    # stable softplus(D) == -log(sigmoid(-D)); identical for both option paths
    S = jnp.maximum(D, 0.0) + jnp.log(1.0 + jnp.exp(-jnp.abs(D)))    # (8, BN)

    # dense weighted accumulation: WS*softplus(D) + WD*D
    # (softplus(-x) = softplus(x) - x already folded into WS/WD by the wrapper)
    w = w_ref[...].astype(jnp.float32)                               # (16, BN)
    acc_ref[...] = acc_ref[...] + w[0:8] * S + w[8:16] * D

    @pl.when(i == n_inner - 1)
    def _finalize():
        sums = jnp.sum(acc_ref[...], axis=1, keepdims=True) * inv_n  # (8, 1)
        out_ref[...] = jnp.zeros((8, 128), jnp.float32) + sums       # lane-dense store


# ----------------------------------------------------------------------------
# JIT wrapper: gather / weight packing in XLA, reduce in Pallas
# ----------------------------------------------------------------------------
def _pack_weights(masks, n_rows, n_pad):
    """(16, n_pad) bf16: rows 0-7 softplus weights WS, rows 8-15 linear WD."""
    (m_int_tar, m_int_src, m_auth_up, m_auth_down,
     m_hub_up, m_hub_down, m_hub_tar, m_auth_src) = [
        m.reshape(-1).astype(jnp.float32) for m in masks]
    ones = jnp.ones((n_rows,), jnp.float32)
    zeros = jnp.zeros((n_rows,), jnp.float32)
    ws = jnp.stack([ones, ones,
                    m_auth_up + m_auth_down,       # row 2: auth up+down
                    m_hub_up + m_hub_down,         # row 3: hub  up+down
                    m_int_tar, m_hub_tar,          # rows 4,5: int_hub halves
                    m_int_src, m_auth_src], 0)     # rows 6,7: int_auth halves
    wd = jnp.stack([zeros, zeros,
                    -m_auth_down, -m_hub_down,     # softplus(-x)=softplus(x)-x
                    zeros, zeros, zeros, zeros], 0)
    w = jnp.concatenate([ws, wd], axis=0)          # (16, n_rows)
    w = jnp.pad(w, ((0, 0), (0, n_pad - n_rows)))  # padded rows -> weight 0
    return w.astype(jnp.bfloat16)                  # {0,1,2,-1}: exact in bf16


@functools.partial(jax.jit, static_argnames=("block_rows", "num_cores"))
def _odin_loss_components(src_table, tar_table, dsel,
                          src_p, src_n, tar_p, tar_n, masks,
                          *, block_rows, num_cores):
    three_e = src_table.shape[1]
    n_rows = int(src_p.size)

    # row-block size: multiple of 128, <= block_rows, rows split over num_cores
    block_rows = max(128, _round_up(block_rows, 128))
    bn = min(block_rows, _round_up(max(pl.cdiv(n_rows, num_cores), 1), 128))
    n_inner = pl.cdiv(pl.cdiv(n_rows, bn), num_cores)
    n_pad = num_cores * n_inner * bn

    # TODO(synk): fuse this data-dependent row gather into the kernel
    # (pl.ANY tables + manual DMA, or VMEM-resident tables for small graphs).
    def gather(table, idx):
        flat = jnp.pad(idx.reshape(-1).astype(jnp.int32), (0, n_pad - n_rows))
        return jnp.take(table, flat, axis=0)                  # (n_pad, 3E)

    sp = gather(src_table, src_p)
    tp = gather(tar_table, tar_p)
    sn = gather(src_table, src_n)
    tn = gather(tar_table, tar_n)

    w = _pack_weights(masks, n_rows, n_pad)                   # (16, n_pad) bf16

    kernel = functools.partial(_odin_block_kernel,
                               inv_n=1.0 / float(n_rows),
                               n_inner=n_inner)

    emb_spec = pl.BlockSpec((bn, three_e), lambda c, i: (c * n_inner + i, 0))
    vmem_limit = (48 if num_cores > 1 else 64) * 1024 * 1024

    out = pl.pallas_call(
        kernel,
        out_shape=jax.ShapeDtypeStruct((num_cores * 8, 128), jnp.float32),
        grid_spec=pltpu.PrefetchScalarGridSpec(
            num_scalar_prefetch=0,
            grid=(num_cores, n_inner),
            in_specs=[
                pl.BlockSpec((3, 8, three_e), lambda c, i: (0, 0, 0)),  # selector (resident)
                emb_spec, emb_spec, emb_spec, emb_spec,                 # sp, tp, sn, tn
                pl.BlockSpec((16, bn), lambda c, i: (0, c * n_inner + i)),
            ],
            out_specs=pl.BlockSpec((8, 128), lambda c, i: (c, 0)),
            scratch_shapes=[pltpu.VMEM((8, bn), jnp.float32)],
        ),
        compiler_params=pltpu.CompilerParams(
            dimension_semantics=("parallel", "arbitrary"),
            vmem_limit_bytes=vmem_limit,
        ),
    )(dsel, sp, tp, sn, tn, w)

    # sum the per-core partial row sums -> (8,), then fold into 6 components
    sums = out[:, 0].reshape(num_cores, 8).sum(axis=0)
    comps = jnp.stack([sums[0],               # loss_edge_src
                       sums[1],               # loss_edge_tar
                       sums[2],               # loss_auth (up+down)
                       sums[4] + sums[5],     # loss_int_hub
                       sums[3],               # loss_hub (up+down)
                       sums[6] + sums[7]])    # loss_int_auth
    return comps


# ----------------------------------------------------------------------------
# ODIN module (JAX / Pallas)
# ----------------------------------------------------------------------------
class ODIN:
    def __init__(self, num_nodes, embedding_size, disen_weight=0.1,
                 edge_weight=1.0, option="default", seed=0,
                 block_rows=2048, transfer_dtype=jnp.bfloat16, num_cores=None):
        self.num_nodes = num_nodes
        self.embedding_size = embedding_size
        self.disen_weight = float(disen_weight)
        self.edge_weight = float(edge_weight)
        self.option = option
        self.block_rows = int(block_rows)
        self.transfer_dtype = transfer_dtype
        self.num_cores = _default_num_cores() if num_cores is None else int(num_cores)

        stdv = 1.0 / math.sqrt(embedding_size)
        keys = jax.random.split(jax.random.PRNGKey(seed), 6)
        shape = (num_nodes, embedding_size)

        def init(k):
            return jax.random.uniform(k, shape, jnp.float32, -stdv, stdv)

        self.srcs_int = init(keys[0])
        self.tars_int = init(keys[1])
        self.srcs_auth = init(keys[2])
        self.tars_auth = init(keys[3])
        self.srcs_hub = init(keys[4])
        self.tars_hub = init(keys[5])
        self._repack()

    def _repack(self):
        """Re-build the channel-packed transfer tables; call after any param update."""
        self.src_table = jnp.concatenate(
            [self.srcs_int, self.srcs_auth, self.srcs_hub], axis=1
        ).astype(self.transfer_dtype)
        self.tar_table = jnp.concatenate(
            [self.tars_int, self.tars_auth, self.tars_hub], axis=1
        ).astype(self.transfer_dtype)
        self.dsel = _build_diff_selector(self.embedding_size).astype(self.transfer_dtype)

    def forward(self, src_p, src_n, tar_p, tar_n,
                mask_int_tar, mask_int_src,
                mask_auth_up, mask_auth_down,
                mask_hub_up, mask_hub_down,
                mask_hub_tar, mask_auth_src):
        masks = (mask_int_tar, mask_int_src, mask_auth_up, mask_auth_down,
                 mask_hub_up, mask_hub_down, mask_hub_tar, mask_auth_src)

        comps = _odin_loss_components(
            self.src_table, self.tar_table, self.dsel,
            src_p, src_n, tar_p, tar_n, masks,
            block_rows=self.block_rows, num_cores=self.num_cores)

        loss_edge_src = comps[0]
        loss_edge_tar = comps[1]
        loss_auth = comps[2]
        loss_int_hub = comps[3]
        loss_hub = comps[4]
        loss_int_auth = comps[5]

        # static option branching (same semantics as the torch module;
        # 'softplus' and log-sigmoid paths are mathematically identical here)
        if "edge-auth" in self.option:
            loss = loss_edge_tar
        elif "edge-hub" in self.option:
            loss = loss_edge_src
        elif "component-hub" in self.option:
            loss = loss_edge_src + self.disen_weight * (loss_hub + loss_int_auth)
        elif "component-auth" in self.option:
            loss = loss_edge_tar + self.disen_weight * (loss_auth + loss_int_hub)
        else:
            loss = (loss_edge_src + loss_edge_tar
                    + self.disen_weight * (loss_hub + loss_int_auth
                                           + loss_auth + loss_int_hub))
        return loss


# ----------------------------------------------------------------------------
# Pure-JAX reference (sanity check; uses the same transfer-dtype cast)
# ----------------------------------------------------------------------------
def _reference_loss(model, src_p, src_n, tar_p, tar_n, masks):
    f32 = jnp.float32

    def tab(t):
        return t.astype(model.transfer_dtype).astype(f32)

    si, sa, sh = tab(model.srcs_int), tab(model.srcs_auth), tab(model.srcs_hub)
    ti, ta, th = tab(model.tars_int), tab(model.tars_auth), tab(model.tars_hub)

    def sc(a, b):
        return jnp.sum(a * b, axis=2)

    sp_i, sp_a, sp_h = si[src_p], sa[src_p], sh[src_p]
    tp_i, tp_a, tp_h = ti[tar_p], ta[tar_p], th[tar_p]
    sn_i, sn_a, sn_h = si[src_n], sa[src_n], sh[src_n]
    tn_i, tn_a, tn_h = ti[tar_n], ta[tar_n], th[tar_n]

    p_int, n_int_src, n_int_tar = sc(sp_i, tp_i), sc(sn_i, tp_i), sc(sp_i, tn_i)
    p_auth, n_auth_src, n_auth_tar = sc(sp_a, tp_a), sc(sn_a, tp_a), sc(sp_a, tn_a)
    p_hub, n_hub_src, n_hub_tar = sc(sp_h, tp_h), sc(sn_h, tp_h), sc(sp_h, tn_h)

    p_edge = p_int + p_auth + p_hub
    n_edge_src = n_int_src + n_auth_src + n_hub_src
    n_edge_tar = n_int_tar + n_auth_tar + n_hub_tar

    def bpr(p, n):
        return -jnp.mean(jnp.log(jax.nn.sigmoid(p - n)))

    def mbpr(p, n, m):
        return -jnp.mean(m * jnp.log(jax.nn.sigmoid(p - n)))

    (m_int_tar, m_int_src, m_auth_up, m_auth_down,
     m_hub_up, m_hub_down, m_hub_tar, m_auth_src) = masks

    loss_edge_tar = bpr(p_edge, n_edge_tar)
    loss_edge_src = bpr(p_edge, n_edge_src)
    loss_auth = mbpr(p_auth, n_auth_tar, m_auth_up) + mbpr(n_auth_tar, p_auth, m_auth_down)
    loss_int_hub = mbpr(p_int, n_int_tar, m_int_tar) + mbpr(p_hub, n_hub_tar, m_hub_tar)
    loss_hub = mbpr(p_hub, n_hub_src, m_hub_up) + mbpr(n_hub_src, p_hub, m_hub_down)
    loss_int_auth = mbpr(p_int, n_int_src, m_int_src) + mbpr(p_auth, n_auth_src, m_auth_src)
    return (loss_edge_src + loss_edge_tar
            + model.disen_weight * (loss_hub + loss_int_auth + loss_auth + loss_int_hub))


# ----------------------------------------------------------------------------
if __name__ == "__main__":
    num_nodes = 64
    embedding_size = 32
    B, K = 2, 8  # src_p / src_n / tar_p / tar_n: (B, K) index tensors

    model = ODIN(num_nodes, embedding_size, disen_weight=0.1,
                 edge_weight=1.0, option="default", seed=0)

    key = jax.random.PRNGKey(0)
    k_sp, k_sn, k_tp, k_tn, k_m = jax.random.split(key, 5)
    src_p = jax.random.randint(k_sp, (B, K), 0, num_nodes)
    src_n = jax.random.randint(k_sn, (B, K), 0, num_nodes)
    tar_p = jax.random.randint(k_tp, (B, K), 0, num_nodes)
    tar_n = jax.random.randint(k_tn, (B, K), 0, num_nodes)

    mask_keys = jax.random.split(k_m, 8)
    masks = [jax.random.bernoulli(mk, 0.5, (B, K)).astype(jnp.float32)
             for mk in mask_keys]

    loss = model.forward(src_p, src_n, tar_p, tar_n, *masks)
    loss = jax.block_until_ready(loss)

    ref = jax.block_until_ready(_reference_loss(model, src_p, src_n, tar_p, tar_n, masks))

    # tolerance covers bf16 transfer/product + MXU bf16 summation differences
    lv, rv = float(loss), float(ref)
    assert abs(lv - rv) <= 1e-2 + 1e-2 * abs(rv), (lv, rv)

    print("KERNEL_OK")
</pallas_src>

<mosaic_0001>
module attributes {stable_mosaic.version = 11 : i64} {
  func.func @_odin_block_kernel(%arg0: i32, %arg1: i32, %arg2: memref<3x8x96xbf16, #tpu.memory_space<vmem>>, %arg3: memref<128x96xbf16, #tpu.memory_space<vmem>>, %arg4: memref<128x96xbf16, #tpu.memory_space<vmem>>, %arg5: memref<128x96xbf16, #tpu.memory_space<vmem>>, %arg6: memref<128x96xbf16, #tpu.memory_space<vmem>>, %arg7: memref<16x128xbf16, #tpu.memory_space<vmem>>, %arg8: memref<8x128xf32, #tpu.memory_space<vmem>>, %arg9: memref<8x128xf32, #tpu.memory_space<vmem>>) attributes {dimension_semantics = [#tpu.dimension_semantics<parallel>, #tpu.dimension_semantics<arbitrary>], iteration_bounds = array<i64: 1, 1>, scalar_prefetch = 0 : i64, scratch_operands = 1 : i64, tpu.core_type = #tpu.core_type<tc>, window_params = [{pipeline_mode = #tpu.pipeline_mode<synchronous>, transform_indices = @transform_0, window_bounds = array<i64: 3, 8, 96>}, {transform_indices = @transform_1, window_bounds = array<i64: 128, 96>}, {transform_indices = @transform_2, window_bounds = array<i64: 128, 96>}, {transform_indices = @transform_3, window_bounds = array<i64: 128, 96>}, {transform_indices = @transform_4, window_bounds = array<i64: 128, 96>}, {transform_indices = @transform_5, window_bounds = array<i64: 16, 128>}, {transform_indices = @transform_6, window_bounds = array<i64: 8, 128>}]} {
    %c0_i32 = arith.constant 0 : i32
    %0 = arith.cmpi eq, %arg1, %c0_i32 : i32
    %1 = arith.extui %0 : i1 to i32
    %c0_i32_0 = arith.constant 0 : i32
    %2 = arith.cmpi ne, %1, %c0_i32_0 : i32
    scf.if %2 {
      %cst_28 = arith.constant 0.000000e+00 : f32
      %44 = vector.broadcast %cst_28 : f32 to vector<8x128xf32>
      %c0_29 = arith.constant 0 : index
      %c0_30 = arith.constant 0 : index
      %45 = vector.load %arg9[%c0_29, %c0_30] : memref<8x128xf32, #tpu.memory_space<vmem>>, vector<8x128xf32>
      tpu.vector_store %arg9[%c0_29, %c0_30], %44 {strides = array<i32>} : memref<8x128xf32, #tpu.memory_space<vmem>>, vector<8x128xf32>,
    } else {
    }
    %c0 = arith.constant 0 : index
    %c0_1 = arith.constant 0 : index
    %3 = vector.load %arg3[%c0, %c0_1] : memref<128x96xbf16, #tpu.memory_space<vmem>>, vector<128x96xbf16>
    %c0_2 = arith.constant 0 : index
    %c0_3 = arith.constant 0 : index
    %4 = vector.load %arg4[%c0_2, %c0_3] : memref<128x96xbf16, #tpu.memory_space<vmem>>, vector<128x96xbf16>
    %c0_4 = arith.constant 0 : index
    %c0_5 = arith.constant 0 : index
    %5 = vector.load %arg5[%c0_4, %c0_5] : memref<128x96xbf16, #tpu.memory_space<vmem>>, vector<128x96xbf16>
    %c0_6 = arith.constant 0 : index
    %c0_7 = arith.constant 0 : index
    %6 = vector.load %arg6[%c0_6, %c0_7] : memref<128x96xbf16, #tpu.memory_space<vmem>>, vector<128x96xbf16>
    %c0_8 = arith.constant 0 : index
    %c0_9 = arith.constant 0 : index
    %c0_10 = arith.constant 0 : index
    %7 = vector.load %arg2[%c0_8, %c0_9, %c0_10] : memref<3x8x96xbf16, #tpu.memory_space<vmem>>, vector<1x8x96xbf16>
    %8 = vector.shape_cast %7 : vector<1x8x96xbf16> to vector<8x96xbf16>
    %c1 = arith.constant 1 : index
    %c0_11 = arith.constant 0 : index
    %c0_12 = arith.constant 0 : index
    %9 = vector.load %arg2[%c1, %c0_11, %c0_12] : memref<3x8x96xbf16, #tpu.memory_space<vmem>>, vector<1x8x96xbf16>
    %10 = vector.shape_cast %9 : vector<1x8x96xbf16> to vector<8x96xbf16>
    %c2 = arith.constant 2 : index
    %c0_13 = arith.constant 0 : index
    %c0_14 = arith.constant 0 : index
    %11 = vector.load %arg2[%c2, %c0_13, %c0_14] : memref<3x8x96xbf16, #tpu.memory_space<vmem>>, vector<1x8x96xbf16>
    %12 = vector.shape_cast %11 : vector<1x8x96xbf16> to vector<8x96xbf16>
    %13 = arith.mulf %3, %4 : vector<128x96xbf16>
    %cst = arith.constant dense<0.000000e+00> : vector<8x128xf32>
    %14 = tpu.matmul %8, %13, %cst {dimension_numbers = #tpu.dot_dimension_numbers<[1], [1], [0], [0], [0, 0, 1, 0], [], []>} : vector<8x96xbf16>, vector<128x96xbf16>, vector<8x128xf32> -> vector<8x128xf32>
    %15 = arith.mulf %5, %4 : vector<128x96xbf16>
    %cst_15 = arith.constant dense<0.000000e+00> : vector<8x128xf32>
    %16 = tpu.matmul %10, %15, %cst_15 {dimension_numbers = #tpu.dot_dimension_numbers<[1], [1], [0], [0], [0, 0, 1, 0], [], []>} : vector<8x96xbf16>, vector<128x96xbf16>, vector<8x128xf32> -> vector<8x128xf32>
    %17 = arith.addf %14, %16 : vector<8x128xf32>
    %18 = arith.mulf %3, %6 : vector<128x96xbf16>
    %cst_16 = arith.constant dense<0.000000e+00> : vector<8x128xf32>
    %19 = tpu.matmul %12, %18, %cst_16 {dimension_numbers = #tpu.dot_dimension_numbers<[1], [1], [0], [0], [0, 0, 1, 0], [], []>} : vector<8x96xbf16>, vector<128x96xbf16>, vector<8x128xf32> -> vector<8x128xf32>
    %20 = arith.addf %17, %19 : vector<8x128xf32>
    %cst_17 = arith.constant 0.000000e+00 : f32
    %21 = vector.broadcast %cst_17 : f32 to vector<8x128xf32>
    %22 = arith.maximumf %20, %21 : vector<8x128xf32>
    %23 = math.absf %20 : vector<8x128xf32>
    %cst_18 = arith.constant 0.000000e+00 : f32
    %24 = vector.broadcast %cst_18 : f32 to vector<8x128xf32>
    %25 = arith.subf %24, %23 : vector<8x128xf32>
    %26 = math.exp %25 : vector<8x128xf32>
    %cst_19 = arith.constant 1.000000e+00 : f32
    %27 = vector.broadcast %cst_19 : f32 to vector<8x128xf32>
    %28 = arith.addf %27, %26 : vector<8x128xf32>
    %29 = math.log %28 : vector<8x128xf32>
    %30 = arith.addf %22, %29 : vector<8x128xf32>
    %c0_20 = arith.constant 0 : index
    %c0_21 = arith.constant 0 : index
    %31 = vector.load %arg7[%c0_20, %c0_21] : memref<16x128xbf16, #tpu.memory_space<vmem>>, vector<16x128xbf16>
    %32 = arith.extf %31 : vector<16x128xbf16> to vector<16x128xf32>
    %c0_22 = arith.constant 0 : index
    %c0_23 = arith.constant 0 : index
    %33 = vector.load %arg9[%c0_22, %c0_23] : memref<8x128xf32, #tpu.memory_space<vmem>>, vector<8x128xf32>
    %34 = vector.extract_strided_slice %32 {offsets = [0, 0], sizes = [8, 128], strides = [1, 1]} : vector<16x128xf32> to vector<8x128xf32>
    %35 = arith.mulf %34, %30 : vector<8x128xf32>
    %36 = arith.addf %33, %35 : vector<8x128xf32>
    %37 = vector.extract_strided_slice %32 {offsets = [8, 0], sizes = [8, 128], strides = [1, 1]} : vector<16x128xf32> to vector<8x128xf32>
    %38 = arith.mulf %37, %20 : vector<8x128xf32>
    %39 = arith.addf %36, %38 : vector<8x128xf32>
    %c0_24 = arith.constant 0 : index
    %c0_25 = arith.constant 0 : index
    %40 = vector.load %arg9[%c0_24, %c0_25] : memref<8x128xf32, #tpu.memory_space<vmem>>, vector<8x128xf32>
    tpu.vector_store %arg9[%c0_24, %c0_25], %39 {strides = array<i32>} : memref<8x128xf32, #tpu.memory_space<vmem>>, vector<8x128xf32>,
    %c0_i32_26 = arith.constant 0 : i32
    %41 = arith.cmpi eq, %arg1, %c0_i32_26 : i32
    %42 = arith.extui %41 : i1 to i32
    %c0_i32_27 = arith.constant 0 : i32
    %43 = arith.cmpi ne, %42, %c0_i32_27 : i32
    scf.if %43 {
      %c0_28 = arith.constant 0 : index
      %c0_29 = arith.constant 0 : index
      %44 = vector.load %arg9[%c0_28, %c0_29] : memref<8x128xf32, #tpu.memory_space<vmem>>, vector<8x128xf32>
      %cst_30 = arith.constant dense<0.000000e+00> : vector<8xf32>
      %45 = vector.multi_reduction <add>, %44, %cst_30 [1] : vector<8x128xf32> to vector<8xf32>
      %46 = vector.shape_cast %45 : vector<8xf32> to vector<8x1xf32>
      %cst_31 = arith.constant 6.250000e-02 : f32
      %47 = vector.broadcast %cst_31 : f32 to vector<8x1xf32>
      %48 = arith.mulf %46, %47 : vector<8x1xf32>
      %cst_32 = arith.constant 0.000000e+00 : f32
      %49 = vector.broadcast %cst_32 : f32 to vector<8x128xf32>
      %50 = vector.broadcast %48 : vector<8x1xf32> to vector<8x128xf32>
      %51 = arith.addf %49, %50 : vector<8x128xf32>
      %c0_33 = arith.constant 0 : index
      %c0_34 = arith.constant 0 : index
      %52 = vector.load %arg8[%c0_33, %c0_34] : memref<8x128xf32, #tpu.memory_space<vmem>>, vector<8x128xf32>
      tpu.vector_store %arg8[%c0_33, %c0_34], %51 {strides = array<i32>} : memref<8x128xf32, #tpu.memory_space<vmem>>, vector<8x128xf32>,
    } else {
    }
    return
  }
  func.func @transform_0(%arg0: i32, %arg1: i32) -> (i32, i32, i32) {
    %c0_i32 = arith.constant 0 : i32
    %c0_i32_0 = arith.constant 0 : i32
    %c0_i32_1 = arith.constant 0 : i32
    %c0_i32_2 = arith.constant 0 : i32
    return %c0_i32, %c0_i32_0, %c0_i32_1 : i32, i32, i32
  }
  func.func @transform_1(%arg0: i32, %arg1: i32) -> (i32, i32) {
    %c1_i32 = arith.constant 1 : i32
    %0 = arith.muli %arg0, %c1_i32 : i32
    %1 = arith.addi %0, %arg1 : i32
    %c0_i32 = arith.constant 0 : i32
    %c0_i32_0 = arith.constant 0 : i32
    return %1, %c0_i32 : i32, i32
  }
  func.func @transform_2(%arg0: i32, %arg1: i32) -> (i32, i32) {
    %c1_i32 = arith.constant 1 : i32
    %0 = arith.muli %arg0, %c1_i32 : i32
    %1 = arith.addi %0, %arg1 : i32
    %c0_i32 = arith.constant 0 : i32
    %c0_i32_0 = arith.constant 0 : i32
    return %1, %c0_i32 : i32, i32
  }
  func.func @transform_3(%arg0: i32, %arg1: i32) -> (i32, i32) {
    %c1_i32 = arith.constant 1 : i32
    %0 = arith.muli %arg0, %c1_i32 : i32
    %1 = arith.addi %0, %arg1 : i32
    %c0_i32 = arith.constant 0 : i32
    %c0_i32_0 = arith.constant 0 : i32
    return %1, %c0_i32 : i32, i32
  }
  func.func @transform_4(%arg0: i32, %arg1: i32) -> (i32, i32) {
    %c1_i32 = arith.constant 1 : i32
    %0 = arith.muli %arg0, %c1_i32 : i32
    %1 = arith.addi %0, %arg1 : i32
    %c0_i32 = arith.constant 0 : i32
    %c0_i32_0 = arith.constant 0 : i32
    return %1, %c0_i32 : i32, i32
  }
  func.func @transform_5(%arg0: i32, %arg1: i32) -> (i32, i32) {
    %c1_i32 = arith.constant 1 : i32
    %0 = arith.muli %arg0, %c1_i32 : i32
    %1 = arith.addi %0, %arg1 : i32
    %c0_i32 = arith.constant 0 : i32
    %c0_i32_0 = arith.constant 0 : i32
    return %c0_i32, %1 : i32, i32
  }
  func.func @transform_6(%arg0: i32, %arg1: i32) -> (i32, i32) {
    %c0_i32 = arith.constant 0 : i32
    %c0_i32_0 = arith.constant 0 : i32
    return %arg0, %c0_i32 : i32, i32
  }
}

</mosaic_0001>

<llo_original>
// kernel: _odin_loss_components.1
$region0: #{_odin_loss_components.1}
  #allocation0 [shape = 'u32[]', space=smem, size = 0x4, offset = 0x4, fixed_abs, tag = 'smem constant byte address 0x4 - core index']
  #allocation1 [shape = 'u32[144,128]{1,0:T(1,128)}', space=vmem, size = 0x12000, scoped, tag = 'internal scratch']
  #allocation2 [shape = 'f32[8,128]{1,0:T(8,128)}', space=vmem, size = 0x1000, scoped, tag = 'scratch operand']
  %s0 = inlined_call_operand.vmem [shape: bf16[3,8,96], index: 0, kind: input, shape index: {}]
  %s1 = inlined_call_operand.vmem [shape: bf16[128,96], index: 1, kind: input, shape index: {}]
  %s2 = inlined_call_operand.vmem [shape: bf16[128,96], index: 2, kind: input, shape index: {}]
  %s3 = inlined_call_operand.vmem [shape: bf16[128,96], index: 3, kind: input, shape index: {}]
  %s4 = inlined_call_operand.vmem [shape: bf16[128,96], index: 4, kind: input, shape index: {}]
  %s5 = inlined_call_operand.vmem [shape: bf16[16,128], index: 5, kind: input, shape index: {}]
  %s6 = inlined_call_operand.vmem [shape: f32[8,128], index: 6, kind: output, shape index: {}]
  %s7 = sld [smem:[#allocation0]]
  $region42: #{_odin_loss_components.1} parent=0
    _
  %s9 = ssub.s32 1, %s7
  %s10 = scalar_select 0, %s9, %s7
  // Predicated region
  $region2: #{_odin_loss_components.1} parent=0 // pred_check
    _
  $region3: #{_odin_loss_components.1} parent=0 // pred_check_branch
    %12 = sbr.rel (0) target = $region5
  $region4: #{_odin_loss_components.1} parent=0 // pred_region
    _
  $region5: #{_odin_loss_components.1} parent=0 // pred_fallthru
    _
  // Predicated region
  $region6: #{_odin_loss_components.1} parent=0 // pred_check
    _
  $region7: #{_odin_loss_components.1} parent=0 // pred_check_branch
    %14 = sbr.rel (0) target = $region9
  $region8: #{_odin_loss_components.1} parent=0 // pred_region
    %s15 = sadd.s32 0, 0
    %s16 = smul.u32 16, %s15
    %p17 = scmp.lt.s32.totalorder %s16, 15
    %s18 = scalar_select %p17, %s16, 15
    %s19 = smul.addr %s18, 4
    %s20 = scalar_lea.vmem %s1, %s19
    %s21 = sadd.s32 0, 0
    %s22 = smul.u32 16, %s21
  $region9: #{_odin_loss_components.1} parent=0 // pred_fallthru
    _
  // Predicated region
  $region10: #{_odin_loss_components.1} parent=0 // pred_check
    _
  $region11: #{_odin_loss_components.1} parent=0 // pred_check_branch
    %24 = sbr.rel (0) target = $region13
  $region12: #{_odin_loss_components.1} parent=0 // pred_region
    %s25 = sadd.s32 0, 0
    %s26 = smul.u32 16, %s25
    %p27 = scmp.lt.s32.totalorder %s26, 15
    %s28 = scalar_select %p27, %s26, 15
    %s29 = smul.addr %s28, 4
    %s30 = scalar_lea.vmem %s2, %s29
    %s31 = sadd.s32 0, 0
    %s32 = smul.u32 16, %s31
  $region13: #{_odin_loss_components.1} parent=0 // pred_fallthru
    _
  // Predicated region
  $region14: #{_odin_loss_components.1} parent=0 // pred_check
    _
  $region15: #{_odin_loss_components.1} parent=0 // pred_check_branch
    %34 = sbr.rel (0) target = $region17
  $region16: #{_odin_loss_components.1} parent=0 // pred_region
    %s35 = sadd.s32 0, 0
    %s36 = smul.u32 16, %s35
    %p37 = scmp.lt.s32.totalorder %s36, 15
    %s38 = scalar_select %p37, %s36, 15
    %s39 = smul.addr %s38, 4
    %s40 = scalar_lea.vmem %s3, %s39
    %s41 = sadd.s32 0, 0
    %s42 = smul.u32 16, %s41
  $region17: #{_odin_loss_components.1} parent=0 // pred_fallthru
    _
  // Predicated region
  $region18: #{_odin_loss_components.1} parent=0 // pred_check
    _
  $region19: #{_odin_loss_components.1} parent=0 // pred_check_branch
    %44 = sbr.rel (0) target = $region21
  $region20: #{_odin_loss_components.1} parent=0 // pred_region
    %s45 = sadd.s32 0, 0
    %s46 = smul.u32 16, %s45
    %p47 = scmp.lt.s32.totalorder %s46, 15
    %s48 = scalar_select %p47, %s46, 15
    %s49 = smul.addr %s48, 4
    %s50 = scalar_lea.vmem %s4, %s49
    %s51 = sadd.s32 0, 0
    %s52 = smul.u32 16, %s51
  $region21: #{_odin_loss_components.1} parent=0 // pred_fallthru
    _
  // Predicated region
  $region22: #{_odin_loss_components.1} parent=0 // pred_check
    _
  $region23: #{_odin_loss_components.1} parent=0 // pred_check_branch
    %54 = sbr.rel (0) target = $region25
  $region24: #{_odin_loss_components.1} parent=0 // pred_region
    %s55 = sadd.s32 0, 0
    %p56 = scmp.lt.s32.totalorder %s55, 0
    %s57 = scalar_select %p56, %s55, 0
    %s58 = smul.addr %s57, 4
    %s59 = scalar_lea.vmem %s5, %s58
    %s60 = sadd.s32 0, 0
  $region25: #{_odin_loss_components.1} parent=0 // pred_fallthru
    _
  %s61 = sadd.s32 0, 0
  %s62 = smul.u32 16, %s61
  %p63 = scmp.lt.s32.totalorder %s62, 15
  %s64 = scalar_select %p63, %s62, 15
  %s65 = smul.addr %s64, 4
  %s66 = scalar_lea.vmem %s1, %s65
  %s67 = sadd.s32 0, 0
  %s68 = smul.u32 16, %s67
  %p69 = scmp.lt.s32.totalorder %s68, 15
  %s70 = scalar_select %p69, %s68, 15
  %s71 = smul.addr %s70, 4
  %s72 = scalar_lea.vmem %s2, %s71
  %s73 = sadd.s32 0, 0
  %s74 = smul.u32 16, %s73
  %p75 = scmp.lt.s32.totalorder %s74, 15
  %s76 = scalar_select %p75, %s74, 15
  %s77 = smul.addr %s76, 4
  %s78 = scalar_lea.vmem %s3, %s77
  %s79 = sadd.s32 0, 0
  %s80 = smul.u32 16, %s79
  %p81 = scmp.lt.s32.totalorder %s80, 15
  %s82 = scalar_select %p81, %s80, 15
  %s83 = smul.addr %s82, 4
  %s84 = scalar_lea.vmem %s4, %s83
  %s85 = sadd.s32 0, 0
  %p86 = scmp.lt.s32.totalorder %s85, 0
  %s87 = scalar_select %p86, %s85, 0
  %s88 = smul.addr %s87, 4
  %s89 = scalar_lea.vmem %s5, %s88
  %s90 = sadd.s32 0, 0
  %s91 = smul.u32 16, %s90
  %p92 = scmp.lt.s32.totalorder %s91, 15
  %s93 = scalar_select %p92, %s91, 15
  %s94 = smul.addr %s93, 4
  %s95 = scalar_lea.vmem %s1, %s94
  %s96 = sadd.s32 0, 0
  %s97 = smul.u32 16, %s96
  %s98 = sadd.s32 0, 0
  %s99 = smul.u32 16, %s98
  %p100 = scmp.lt.s32.totalorder %s99, 15
  %s101 = scalar_select %p100, %s99, 15
  %s102 = smul.addr %s101, 4
  %s103 = scalar_lea.vmem %s2, %s102
  %s104 = sadd.s32 0, 0
  %s105 = smul.u32 16, %s104
  %s106 = sadd.s32 0, 0
  %s107 = smul.u32 16, %s106
  %p108 = scmp.lt.s32.totalorder %s107, 15
  %s109 = scalar_select %p108, %s107, 15
  %s110 = smul.addr %s109, 4
  %s111 = scalar_lea.vmem %s3, %s110
  %s112 = sadd.s32 0, 0
  %s113 = smul.u32 16, %s112
  %s114 = sadd.s32 0, 0
  %s115 = smul.u32 16, %s114
  %p116 = scmp.lt.s32.totalorder %s115, 15
  %s117 = scalar_select %p116, %s115, 15
  %s118 = smul.addr %s117, 4
  %s119 = scalar_lea.vmem %s4, %s118
  %s120 = sadd.s32 0, 0
  %s121 = smul.u32 16, %s120
  %s122 = sadd.s32 0, 0
  %p123 = scmp.lt.s32.totalorder %s122, 0
  %s124 = scalar_select %p123, %s122, 0
  %s125 = smul.addr %s124, 4
  %s126 = scalar_lea.vmem %s5, %s125
  %s127 = sadd.s32 0, 0
  %p129 = scmp.eq.s32.totalorder 0, 0
  // Predicated region
  $region26: #{_odin_loss_components.1} parent=0 // pred_check
    %p130 = pneg %p129
  $region27: #{_odin_loss_components.1} parent=0 // pred_check_branch
    %132 = sbr.rel (%p130) target = $region29
  $region28: #{_odin_loss_components.1} parent=0 // pred_region
    %133 = vst [vmem:[#allocation2] sm:$0xff] 0.0
  $region29: #{_odin_loss_components.1} parent=0 // pred_fallthru
    _
  %v134 = vld [vmem:[%s95] sm:$0xf]
  %v135 = vld [vmem:[%s95 + $0x4] sm:$0xf]
  %v136 = vld [vmem:[%s95 + $0x8] sm:$0xf]
  %v137 = vld [vmem:[%s95 + $0xc] sm:$0xf]
  %v138 = vld [vmem:[%s95 + $0x10] sm:$0xf]
  %v139 = vld [vmem:[%s95 + $0x14] sm:$0xf]
  %v140 = vld [vmem:[%s95 + $0x18] sm:$0xf]
  %v141 = vld [vmem:[%s95 + $0x1c] sm:$0xf]
  %v142 = vld [vmem:[%s95 + $0x20] sm:$0xf]
  %v143 = vld [vmem:[%s95 + $0x24] sm:$0xf]
  %v144 = vld [vmem:[%s95 + $0x28] sm:$0xf]
  %v145 = vld [vmem:[%s95 + $0x2c] sm:$0xf]
  %v146 = vld [vmem:[%s95 + $0x30] sm:$0xf]
  %v147 = vld [vmem:[%s95 + $0x34] sm:$0xf]
  %v148 = vld [vmem:[%s95 + $0x38] sm:$0xf]
  %v149 = vld [vmem:[%s95 + $0x3c] sm:$0xf]
  %v150 = vld [vmem:[%s103] sm:$0xf]
  %v151 = vld [vmem:[%s103 + $0x4] sm:$0xf]
  %v152 = vld [vmem:[%s103 + $0x8] sm:$0xf]
  %v153 = vld [vmem:[%s103 + $0xc] sm:$0xf]
  %v154 = vld [vmem:[%s103 + $0x10] sm:$0xf]
  %v155 = vld [vmem:[%s103 + $0x14] sm:$0xf]
  %v156 = vld [vmem:[%s103 + $0x18] sm:$0xf]
  %v157 = vld [vmem:[%s103 + $0x1c] sm:$0xf]
  %v158 = vld [vmem:[%s103 + $0x20] sm:$0xf]
  %v159 = vld [vmem:[%s103 + $0x24] sm:$0xf]
  %v160 = vld [vmem:[%s103 + $0x28] sm:$0xf]
  %v161 = vld [vmem:[%s103 + $0x2c] sm:$0xf]
  %v162 = vld [vmem:[%s103 + $0x30] sm:$0xf]
  %v163 = vld [vmem:[%s103 + $0x34] sm:$0xf]
  %v164 = vld [vmem:[%s103 + $0x38] sm:$0xf]
  %v165 = vld [vmem:[%s103 + $0x3c] sm:$0xf]
  %v166 = vld [vmem:[%s111] sm:$0xf]
  %v167 = vld [vmem:[%s111 + $0x4] sm:$0xf]
  %v168 = vld [vmem:[%s111 + $0x8] sm:$0xf]
  %v169 = vld [vmem:[%s111 + $0xc] sm:$0xf]
  %v170 = vld [vmem:[%s111 + $0x10] sm:$0xf]
  %v171 = vld [vmem:[%s111 + $0x14] sm:$0xf]
  %v172 = vld [vmem:[%s111 + $0x18] sm:$0xf]
  %v173 = vld [vmem:[%s111 + $0x1c] sm:$0xf]
  %v174 = vld [vmem:[%s111 + $0x20] sm:$0xf]
  %v175 = vld [vmem:[%s111 + $0x24] sm:$0xf]
  %v176 = vld [vmem:[%s111 + $0x28] sm:$0xf]
  %v177 = vld [vmem:[%s111 + $0x2c] sm:$0xf]
  %v178 = vld [vmem:[%s111 + $0x30] sm:$0xf]
  %v179 = vld [vmem:[%s111 + $0x34] sm:$0xf]
  %v180 = vld [vmem:[%s111 + $0x38] sm:$0xf]
  %v181 = vld [vmem:[%s111 + $0x3c] sm:$0xf]
  %v182 = vld [vmem:[%s119] sm:$0xf]
  %v183 = vld [vmem:[%s119 + $0x4] sm:$0xf]
  %v184 = vld [vmem:[%s119 + $0x8] sm:$0xf]
  %v185 = vld [vmem:[%s119 + $0xc] sm:$0xf]
  %v186 = vld [vmem:[%s119 + $0x10] sm:$0xf]
  %v187 = vld [vmem:[%s119 + $0x14] sm:$0xf]
  %v188 = vld [vmem:[%s119 + $0x18] sm:$0xf]
  %v189 = vld [vmem:[%s119 + $0x1c] sm:$0xf]
  %v190 = vld [vmem:[%s119 + $0x20] sm:$0xf]
  %v191 = vld [vmem:[%s119 + $0x24] sm:$0xf]
  %v192 = vld [vmem:[%s119 + $0x28] sm:$0xf]
  %v193 = vld [vmem:[%s119 + $0x2c] sm:$0xf]
  %v194 = vld [vmem:[%s119 + $0x30] sm:$0xf]
  %v195 = vld [vmem:[%s119 + $0x34] sm:$0xf]
  %v196 = vld [vmem:[%s119 + $0x38] sm:$0xf]
  %v197 = vld [vmem:[%s119 + $0x3c] sm:$0xf]
  %v198 = vld [vmem:[%s0] sm:$0xf]
  %s199 = scalar_lea.vmem %s0, 4
  %v200 = vld [vmem:[%s199] sm:$0xf]
  %s201 = scalar_lea.vmem %s0, 8
  %v202 = vld [vmem:[%s201] sm:$0xf]
  %v203 = vmul.bf16 %v134, %v150
  %v204 = vmul.bf16 %v135, %v151
  %v205 = vmul.bf16 %v136, %v152
  %v206 = vmul.bf16 %v137, %v153
  %v207 = vmul.bf16 %v138, %v154
  %v208 = vmul.bf16 %v139, %v155
  %v209 = vmul.bf16 %v140, %v156
  %v210 = vmul.bf16 %v141, %v157
  %v211 = vmul.bf16 %v142, %v158
  %v212 = vmul.bf16 %v143, %v159
  %v213 = vmul.bf16 %v144, %v160
  %v214 = vmul.bf16 %v145, %v161
  %v215 = vmul.bf16 %v146, %v162
  %v216 = vmul.bf16 %v147, %v163
  %v217 = vmul.bf16 %v148, %v164
  %v218 = vmul.bf16 %v149, %v165
  %v219 = vmul.bf16 %v166, %v150
  %v220 = vmul.bf16 %v167, %v151
  %v221 = vmul.bf16 %v168, %v152
  %v222 = vmul.bf16 %v169, %v153
  %v223 = vmul.bf16 %v170, %v154
  %v224 = vmul.bf16 %v171, %v155
  %v225 = vmul.bf16 %v172, %v156
  %v226 = vmul.bf16 %v173, %v157
  %v227 = vmul.bf16 %v174, %v158
  %v228 = vmul.bf16 %v175, %v159
  %v229 = vmul.bf16 %v176, %v160
  %v230 = vmul.bf16 %v177, %v161
  %v231 = vmul.bf16 %v178, %v162
  %v232 = vmul.bf16 %v179, %v163
  %v233 = vmul.bf16 %v180, %v164
  %v234 = vmul.bf16 %v181, %v165
  %v251 = vunpack.c.l.b16 %v219
  %v252 = vunpack.c.l.b16 %v220
  %v253 = vunpack.c.l.b16 %v221
  %v254 = vunpack.c.l.b16 %v222
  %v255 = vunpack.c.l.b16 %v223
  %v256 = vunpack.c.l.b16 %v224
  %v257 = vunpack.c.l.b16 %v225
  %v258 = vunpack.c.l.b16 %v226
  %v259 = vunpack.c.l.b16 %v227
  %v260 = vunpack.c.l.b16 %v228
  %v261 = vunpack.c.l.b16 %v229
  %v262 = vunpack.c.l.b16 %v230
  %v263 = vunpack.c.l.b16 %v231
  %v264 = vunpack.c.l.b16 %v232
  %v265 = vunpack.c.l.b16 %v233
  %v266 = vunpack.c.l.b16 %v234
  %v267 = vpack.c.b16 %v252, %v251
  %v268 = vpack.c.b16 %v254, %v253
  %v269 = vpack.c.b16 %v256, %v255
  %v270 = vpack.c.b16 %v258, %v257
  %v271 = vpack.c.b16 %v260, %v259
  %v272 = vpack.c.b16 %v262, %v261
  %v273 = vpack.c.b16 %v264, %v263
  %v274 = vpack.c.b16 %v266, %v265
  %vm275 = vcmask 785408
  %v277 = vsel %vm275, %v200, 0
  %v280 = vsel %vm275, %v267, 0
  %v283 = vsel %vm275, %v268, 0
  %v286 = vsel %vm275, %v269, 0
  %v289 = vsel %vm275, %v270, 0
  %v292 = vsel %vm275, %v271, 0
  %v295 = vsel %vm275, %v272, 0
  %v298 = vsel %vm275, %v273, 0
  %v301 = vsel %vm275, %v274, 0
  %303 = vmatprep.subr.bf16.mxu0 0
  %304 = vmatpush1.bf16.xpose.msra.mxu0 %v301
  %305 = vmatprep.subr.bf16.mxu0 0
  %306 = vmatpush1.bf16.xpose.msra.mxu0 %v298
  %307 = vmatprep.subr.bf16.mxu0 0
  %308 = vmatpush1.bf16.xpose.msra.mxu0 %v295
  %309 = vmatprep.subr.bf16.mxu0 0
  %310 = vmatpush1.bf16.xpose.msra.mxu0 %v292
  %311 = vmatprep.subr.bf16.mxu0 0
  %312 = vmatpush1.bf16.xpose.msra.mxu0 %v289
  %313 = vmatprep.subr.bf16.mxu0 0
  %314 = vmatpush1.bf16.xpose.msra.mxu0 %v286
  %315 = vmatprep.subr.bf16.mxu0 0
  %316 = vmatpush1.bf16.xpose.msra.mxu0 %v283
  %317 = vmatprep.subr.bf16.mxu0 0
  %318 = vmatpush1.bf16.xpose.msra.mxu0 %v280
  %319 = vmatprep.subr.bf16.mxu0 0
  %320 = vmatpush2.bf16.xpose.msra.mxu0 0
  %321 = vmatprep.subr.bf16.mxu0 0
  %322 = vmatpush2.bf16.xpose.msra.mxu0 0
  %323 = vmatprep.subr.bf16.mxu0 0
  %324 = vmatpush2.bf16.xpose.msra.mxu0 0
  %325 = vmatprep.subr.bf16.mxu0 0
  %326 = vmatpush2.bf16.xpose.msra.mxu0 0
  %327 = vmatprep.subr.bf16.mxu0 0
  %328 = vmatpush2.bf16.xpose.msra.mxu0 0
  %329 = vmatprep.subr.bf16.mxu0 0
  %330 = vmatpush2.bf16.xpose.msra.mxu0 0
  %331 = vmatprep.subr.bf16.mxu0 0
  %332 = vmatpush2.bf16.xpose.msra.mxu0 0
  %333 = vmatprep.subr.bf16.mxu0 0
  %334 = vmatpush2.bf16.xpose.msra.mxu0 0
  %335 = vmatprep.mubr.bf16.mxu0 0
  %336 = vmatmul.mubr.bf16.gmra.mxu0 %v277
  %v337 = vpop.f32.mrf.mxu0
  %v338 = vadd.f32 0.0, %v337
  %v339 = vpop.f32.mrf.mxu0
  %v340 = vpop.f32.mrf.mxu0
  %v341 = vpop.f32.mrf.mxu0
  %342 = vdwg.mxu0
  %v359 = vunpack.c.l.b16 %v203
  %v360 = vunpack.c.l.b16 %v204
  %v361 = vunpack.c.l.b16 %v205
  %v362 = vunpack.c.l.b16 %v206
  %v363 = vunpack.c.l.b16 %v207
  %v364 = vunpack.c.l.b16 %v208
  %v365 = vunpack.c.l.b16 %v209
  %v366 = vunpack.c.l.b16 %v210
  %v367 = vunpack.c.l.b16 %v211
  %v368 = vunpack.c.l.b16 %v212
  %v369 = vunpack.c.l.b16 %v213
  %v370 = vunpack.c.l.b16 %v214
  %v371 = vunpack.c.l.b16 %v215
  %v372 = vunpack.c.l.b16 %v216
  %v373 = vunpack.c.l.b16 %v217
  %v374 = vunpack.c.l.b16 %v218
  %v375 = vpack.c.b16 %v360, %v359
  %v376 = vpack.c.b16 %v362, %v361
  %v377 = vpack.c.b16 %v364, %v363
  %v378 = vpack.c.b16 %v366, %v365
  %v379 = vpack.c.b16 %v368, %v367
  %v380 = vpack.c.b16 %v370, %v369
  %v381 = vpack.c.b16 %v372, %v371
  %v382 = vpack.c.b16 %v374, %v373
  %v384 = vsel %vm275, %v198, 0
  %v387 = vsel %vm275, %v375, 0
  %v390 = vsel %vm275, %v376, 0
  %v393 = vsel %vm275, %v377, 0
  %v396 = vsel %vm275, %v378, 0
  %v399 = vsel %vm275, %v379, 0
  %v402 = vsel %vm275, %v380, 0
  %v405 = vsel %vm275, %v381, 0
  %v408 = vsel %vm275, %v382, 0
  %410 = vmatprep.subr.bf16.mxu0 0
  %411 = vmatpush1.bf16.xpose.msra.mxu0 %v408
  %412 = vmatprep.subr.bf16.mxu0 0
  %413 = vmatpush1.bf16.xpose.msra.mxu0 %v405
  %414 = vmatprep.subr.bf16.mxu0 0
  %415 = vmatpush1.bf16.xpose.msra.mxu0 %v402
  %416 = vmatprep.subr.bf16.mxu0 0
  %417 = vmatpush1.bf16.xpose.msra.mxu0 %v399
  %418 = vmatprep.subr.bf16.mxu0 0
  %419 = vmatpush1.bf16.xpose.msra.mxu0 %v396
  %420 = vmatprep.subr.bf16.mxu0 0
  %421 = vmatpush1.bf16.xpose.msra.mxu0 %v393
  %422 = vmatprep.subr.bf16.mxu0 0
  %423 = vmatpush1.bf16.xpose.msra.mxu0 %v390
  %424 = vmatprep.subr.bf16.mxu0 0
  %425 = vmatpush1.bf16.xpose.msra.mxu0 %v387
  %426 = vmatprep.subr.bf16.mxu0 0
  %427 = vmatpush2.bf16.xpose.msra.mxu0 0
  %428 = vmatprep.subr.bf16.mxu0 0
  %429 = vmatpush2.bf16.xpose.msra.mxu0 0
  %430 = vmatprep.subr.bf16.mxu0 0
  %431 = vmatpush2.bf16.xpose.msra.mxu0 0
  %432 = vmatprep.subr.bf16.mxu0 0
  %433 = vmatpush2.bf16.xpose.msra.mxu0 0
  %434 = vmatprep.subr.bf16.mxu0 0
  %435 = vmatpush2.bf16.xpose.msra.mxu0 0
  %436 = vmatprep.subr.bf16.mxu0 0
  %437 = vmatpush2.bf16.xpose.msra.mxu0 0
  %438 = vmatprep.subr.bf16.mxu0 0
  %439 = vmatpush2.bf16.xpose.msra.mxu0 0
  %440 = vmatprep.subr.bf16.mxu0 0
  %441 = vmatpush2.bf16.xpose.msra.mxu0 0
  %442 = vmatprep.mubr.bf16.mxu0 0
  %443 = vmatmul.mubr.bf16.gmra.mxu0 %v384
  %v444 = vpop.f32.mrf.mxu0
  %v445 = vadd.f32 %v338, %v444
  %v446 = vpop.f32.mrf.mxu0
  %v447 = vpop.f32.mrf.mxu0
  %v448 = vpop.f32.mrf.mxu0
  %449 = vdwg.mxu0
  %v450 = vmul.bf16 %v134, %v182
  %v451 = vmul.bf16 %v135, %v183
  %v452 = vmul.bf16 %v136, %v184
  %v453 = vmul.bf16 %v137, %v185
  %v454 = vmul.bf16 %v138, %v186
  %v455 = vmul.bf16 %v139, %v187
  %v456 = vmul.bf16 %v140, %v188
  %v457 = vmul.bf16 %v141, %v189
  %v458 = vmul.bf16 %v142, %v190
  %v459 = vmul.bf16 %v143, %v191
  %v460 = vmul.bf16 %v144, %v192
  %v461 = vmul.bf16 %v145, %v193
  %v462 = vmul.bf16 %v146, %v194
  %v463 = vmul.bf16 %v147, %v195
  %v464 = vmul.bf16 %v148, %v196
  %v465 = vmul.bf16 %v149, %v197
  %v482 = vunpack.c.l.b16 %v450
  %v483 = vunpack.c.l.b16 %v451
  %v484 = vunpack.c.l.b16 %v452
  %v485 = vunpack.c.l.b16 %v453
  %v486 = vunpack.c.l.b16 %v454
  %v487 = vunpack.c.l.b16 %v455
  %v488 = vunpack.c.l.b16 %v456
  %v489 = vunpack.c.l.b16 %v457
  %v490 = vunpack.c.l.b16 %v458
  %v491 = vunpack.c.l.b16 %v459
  %v492 = vunpack.c.l.b16 %v460
  %v493 = vunpack.c.l.b16 %v461
  %v494 = vunpack.c.l.b16 %v462
  %v495 = vunpack.c.l.b16 %v463
  %v496 = vunpack.c.l.b16 %v464
  %v497 = vunpack.c.l.b16 %v465
  %v498 = vpack.c.b16 %v483, %v482
  %v499 = vpack.c.b16 %v485, %v484
  %v500 = vpack.c.b16 %v487, %v486
  %v501 = vpack.c.b16 %v489, %v488
  %v502 = vpack.c.b16 %v491, %v490
  %v503 = vpack.c.b16 %v493, %v492
  %v504 = vpack.c.b16 %v495, %v494
  %v505 = vpack.c.b16 %v497, %v496
  %v507 = vsel %vm275, %v202, 0
  %v510 = vsel %vm275, %v498, 0
  %v513 = vsel %vm275, %v499, 0
  %v516 = vsel %vm275, %v500, 0
  %v519 = vsel %vm275, %v501, 0
  %v522 = vsel %vm275, %v502, 0
  %v525 = vsel %vm275, %v503, 0
  %v528 = vsel %vm275, %v504, 0
  %v531 = vsel %vm275, %v505, 0
  %533 = vmatprep.subr.bf16.mxu0 0
  %534 = vmatpush1.bf16.xpose.msra.mxu0 %v531
  %535 = vmatprep.subr.bf16.mxu0 0
  %536 = vmatpush1.bf16.xpose.msra.mxu0 %v528
  %537 = vmatprep.subr.bf16.mxu0 0
  %538 = vmatpush1.bf16.xpose.msra.mxu0 %v525
  %539 = vmatprep.subr.bf16.mxu0 0
  %540 = vmatpush1.bf16.xpose.msra.mxu0 %v522
  %541 = vmatprep.subr.bf16.mxu0 0
  %542 = vmatpush1.bf16.xpose.msra.mxu0 %v519
  %543 = vmatprep.subr.bf16.mxu0 0
  %544 = vmatpush1.bf16.xpose.msra.mxu0 %v516
  %545 = vmatprep.subr.bf16.mxu0 0
  %546 = vmatpush1.bf16.xpose.msra.mxu0 %v513
  %547 = vmatprep.subr.bf16.mxu0 0
  %548 = vmatpush1.bf16.xpose.msra.mxu0 %v510
  %549 = vmatprep.subr.bf16.mxu0 0
  %550 = vmatpush2.bf16.xpose.msra.mxu0 0
  %551 = vmatprep.subr.bf16.mxu0 0
  %552 = vmatpush2.bf16.xpose.msra.mxu0 0
  %553 = vmatprep.subr.bf16.mxu0 0
  %554 = vmatpush2.bf16.xpose.msra.mxu0 0
  %555 = vmatprep.subr.bf16.mxu0 0
  %556 = vmatpush2.bf16.xpose.msra.mxu0 0
  %557 = vmatprep.subr.bf16.mxu0 0
  %558 = vmatpush2.bf16.xpose.msra.mxu0 0
  %559 = vmatprep.subr.bf16.mxu0 0
  %560 = vmatpush2.bf16.xpose.msra.mxu0 0
  %561 = vmatprep.subr.bf16.mxu0 0
  %562 = vmatpush2.bf16.xpose.msra.mxu0 0
  %563 = vmatprep.subr.bf16.mxu0 0
  %564 = vmatpush2.bf16.xpose.msra.mxu0 0
  %565 = vmatprep.mubr.bf16.mxu0 0
  %566 = vmatmul.mubr.bf16.gmra.mxu0 %v507
  %v567 = vpop.f32.mrf.mxu0
  %v568 = vadd.f32 0.0, %v567
  %v569 = vpop.f32.mrf.mxu0
  %v570 = vpop.f32.mrf.mxu0
  %v571 = vpop.f32.mrf.mxu0
  %572 = vdwg.mxu0
  %v573 = vadd.f32 %v445, %v568
  %v574 = vmax.f32 %v573, 0.0
  %v575 = vand.u32 2147483647, %v573
  %v576 = vsub.f32 0.0, %v575
  %v577 = vmul.f32 %v576, 1.442695
  %v578 = vpow.pop %v577
  %v579 = vadd.f32 %v578, 1.0
  %v580 = vlog2.pop %v579
  %v581 = vmul.f32 %v580, 0.6931472
  %v582 = vadd.f32 %v574, %v581
  %v583 = vld [vmem:[%s126] sm:$0xf]
  %v584 = vld [vmem:[%s126 + $0x4] sm:$0xf]
  %v585 = vunpack.c.l.bf16 %v583
  %v586 = vunpack.c.l.bf16 %v584
  %v587 = vld [vmem:[#allocation2] sm:$0xff]
  %v588 = vmul.f32 %v585, %v582
  %v589 = vadd.f32 %v587, %v588
  %v590 = vmul.f32 %v586, %v573
  %v591 = vadd.f32 %v589, %v590
  %592 = vst [vmem:[#allocation2] sm:$0xff] %v591
  // Predicated region
  $region30: #{_odin_loss_components.1} parent=0 // pred_check
    %p593 = pneg %p129
  $region31: #{_odin_loss_components.1} parent=0 // pred_check_branch
    %595 = sbr.rel (%p593) target = $region33
  $region32: #{_odin_loss_components.1} parent=0 // pred_region
    %v596 = vld [vmem:[#allocation2] sm:$0xff]
    %597 = vadd.xlane.f32.xlu0 %v596
    %v598 = vpop.xlane.xlu0 %597
    %v599 = vmul.f32 %v598, 0.0625
    %v600 = vadd.f32 %v599, 0.0
    %601 = vst [vmem:[%s6] sm:$0xff] %v600
  $region33: #{_odin_loss_components.1} parent=0 // pred_fallthru
    _
  // Predicated region
  $region34: #{_odin_loss_components.1} parent=0 // pred_check
    _
  $region35: #{_odin_loss_components.1} parent=0 // pred_check_branch
    %603 = sbr.rel (0) target = $region37
  $region36: #{_odin_loss_components.1} parent=0 // pred_region
    _
  $region37: #{_odin_loss_components.1} parent=0 // pred_fallthru
    _
  // Predicated region
  $region38: #{_odin_loss_components.1} parent=0 // pred_check
    _
  $region39: #{_odin_loss_components.1} parent=0 // pred_check_branch
    %605 = sbr.rel (0) target = $region41
  $region40: #{_odin_loss_components.1} parent=0 // pred_region
    _
  $region41: #{_odin_loss_components.1} parent=0 // pred_fallthru
    _

</llo_original>
